<compile_context>
chip_gen: v5e
topology: v5e:2x2
jax: 0.10.0
libtpu: 0.0.40
codegen_flags: <defaults>
</compile_context>

<pallas_src>
import functools

import jax
import jax.numpy as jnp
from jax.experimental import pallas as pl
from jax.experimental.pallas import tpu as pltpu

LANE = 128            # TPU lane width
MAX_ROW_TILE = 512    # rows per grid step upper bound (multiple of 8 sublanes)
HIDDEN = 128          # MeshGraphNets hidden size
LN_EPS = 1e-5


def _round_up(x, m):
    return (x + m - 1) // m * m


def _pick_row_tile(n):
    # Large tiles amortize the ~0.35us per-grid-step overhead and fill the MXU
    # M dimension, but keep >= 2 grid steps so both v7x TensorCores get work
    # even on small graphs.
    half = _round_up((n + 1) // 2, 8)
    return max(8, min(MAX_ROW_TILE, half))


# ---------------------------------------------------------------------------
# Fused split-K MLP (+ optional LayerNorm, + optional residual) Pallas kernel
#
#   h = ReLU(sum_i x_i @ w1_i + b1)          (bf16 MXU operands, f32 accum)
#   h = ReLU(h @ w2 + b2)
#   h = h @ w3 + b3
#   if use_ln:  h = LayerNorm(h) * g + beta  (f32)
#   if has_res: h = h + res
# ---------------------------------------------------------------------------
def _gnn_mlp_kernel(*refs, n_in, use_ln, has_res):
    x_refs = refs[:n_in]
    w1_refs = refs[n_in:2 * n_in]
    (b1_ref, w2_ref, b2_ref, w3_ref, b3_ref,
     g_ref, beta_ref) = refs[2 * n_in:2 * n_in + 7]
    res_ref = refs[2 * n_in + 7] if has_res else None
    o_ref = refs[-1]

    # Layer 1: split-K matmul replaces concat([x_src, x_dst, e]) @ w1.
    h = jnp.dot(x_refs[0][...].astype(jnp.bfloat16), w1_refs[0][...],
                preferred_element_type=jnp.float32)
    for i in range(1, n_in):
        h = h + jnp.dot(x_refs[i][...].astype(jnp.bfloat16), w1_refs[i][...],
                        preferred_element_type=jnp.float32)
    h = jnp.maximum(h + b1_ref[...], 0.0)

    # Layer 2
    h = jnp.dot(h.astype(jnp.bfloat16), w2_ref[...],
                preferred_element_type=jnp.float32)
    h = jnp.maximum(h + b2_ref[...], 0.0)

    # Layer 3
    h = jnp.dot(h.astype(jnp.bfloat16), w3_ref[...],
                preferred_element_type=jnp.float32) + b3_ref[...]

    if use_ln:
        mu = jnp.mean(h, axis=-1, keepdims=True)
        var = jnp.mean(jnp.square(h - mu), axis=-1, keepdims=True)
        h = (h - mu) * jax.lax.rsqrt(var + LN_EPS)
        h = h * g_ref[...] + beta_ref[...]

    if has_res:
        h = h + res_ref[...]

    o_ref[...] = h


def run_gnn_mlp(xs, p, use_ln, residual=None):
    """xs: list of [N, Din_i] f32 operands -> [N, Dout] f32 fused MLP output."""
    N = xs[0].shape[0]
    n_in = len(xs)
    dout = p["dout"]
    dout_p = p["w3"].shape[1]
    has_res = residual is not None

    # LayerNorm statistics are taken over the padded lane width; only legal
    # when the true output width is lane-aligned (always 128 here).
    if use_ln:
        assert dout == dout_p, "LayerNorm requires lane-aligned output width"

    # Only the tiny encoder inputs (Din=2/3) need lane padding; processor
    # inputs are already 128-wide so this is a no-op for them.
    xs_p = []
    for x, d in zip(xs, p["din_list"]):
        dp = _round_up(d, LANE)
        if dp != d:
            x = jnp.zeros((N, dp), x.dtype).at[:, :d].set(x)
        xs_p.append(x)

    row_tile = _pick_row_tile(N)
    grid = (pl.cdiv(N, row_tile),)

    operands = []
    in_specs = []
    for x in xs_p:
        in_specs.append(pl.BlockSpec((row_tile, x.shape[1]), lambda i: (i, 0)))
        operands.append(x)
    for w in p["w1"]:
        in_specs.append(pl.BlockSpec(w.shape, lambda i: (0, 0)))
        operands.append(w)
    for name in ("b1", "w2", "b2", "w3", "b3", "g", "beta"):
        arr = p[name]
        in_specs.append(pl.BlockSpec(arr.shape, lambda i: (0, 0)))
        operands.append(arr)
    if has_res:
        in_specs.append(pl.BlockSpec((row_tile, dout_p), lambda i: (i, 0)))
        operands.append(residual)

    out = pl.pallas_call(
        functools.partial(_gnn_mlp_kernel, n_in=n_in, use_ln=use_ln,
                          has_res=has_res),
        out_shape=jax.ShapeDtypeStruct((N, dout_p), jnp.float32),
        grid_spec=pltpu.PrefetchScalarGridSpec(
            num_scalar_prefetch=0,
            grid=grid,
            in_specs=in_specs,
            out_specs=pl.BlockSpec((row_tile, dout_p), lambda i: (i, 0)),
        ),
        compiler_params=pltpu.CompilerParams(
            dimension_semantics=("parallel",),
            vmem_limit_bytes=48 * 1024 * 1024,
        ),
    )(*operands)

    if dout_p != dout:
        out = out[:, :dout]
    return out


# ---------------------------------------------------------------------------
# Deterministic parameter initialization (mirrors nn.Linear default init).
# Weights are stored pre-split (per split-K operand), pre-padded and pre-cast
# to bf16; biases / LN params stay f32.
# ---------------------------------------------------------------------------
def init_mlp_params(key, din_list, dout):
    din_total = sum(din_list)
    ks = jax.random.split(key, 3)

    def lin(k, a, b):
        kw, kb = jax.random.split(k)
        lim = 1.0 / jnp.sqrt(jnp.float32(a))
        w = jax.random.uniform(kw, (a, b), jnp.float32, -lim, lim)
        bb = jax.random.uniform(kb, (b,), jnp.float32, -lim, lim)
        return w, bb

    w1, b1 = lin(ks[0], din_total, HIDDEN)
    w2, b2 = lin(ks[1], HIDDEN, HIDDEN)
    w3, b3 = lin(ks[2], HIDDEN, dout)

    # Split w1 along K into one block per operand, pad each to a lane multiple.
    w1_blocks = []
    off = 0
    for d in din_list:
        dp = _round_up(d, LANE)
        blk = jnp.zeros((dp, HIDDEN), jnp.float32).at[:d, :].set(w1[off:off + d])
        w1_blocks.append(blk.astype(jnp.bfloat16))
        off += d

    dout_p = _round_up(dout, LANE)
    w3_p = (jnp.zeros((HIDDEN, dout_p), jnp.float32)
            .at[:, :dout].set(w3).astype(jnp.bfloat16))
    b3_p = jnp.zeros((1, dout_p), jnp.float32).at[0, :dout].set(b3)
    g = jnp.zeros((1, dout_p), jnp.float32).at[0, :dout].set(1.0)
    beta = jnp.zeros((1, dout_p), jnp.float32)

    return dict(
        w1=w1_blocks, b1=b1.reshape(1, HIDDEN),
        w2=w2.astype(jnp.bfloat16), b2=b2.reshape(1, HIDDEN),
        w3=w3_p, b3=b3_p, g=g, beta=beta,
        din_list=tuple(din_list), dout=dout,
    )


def init_simulator_params(key, message_passing_num, node_input_size,
                          edge_input_size, output_size):
    keys = jax.random.split(key, 3 + 2 * message_passing_num)
    processor = []
    for i in range(message_passing_num):
        processor.append(dict(
            edge=init_mlp_params(keys[2 + 2 * i], [HIDDEN, HIDDEN, HIDDEN], HIDDEN),
            node=init_mlp_params(keys[3 + 2 * i], [HIDDEN, HIDDEN], HIDDEN),
        ))
    return dict(
        node_enc=init_mlp_params(keys[0], [node_input_size], HIDDEN),
        edge_enc=init_mlp_params(keys[1], [edge_input_size], HIDDEN),
        processor=processor,
        decoder=init_mlp_params(keys[2 + 2 * message_passing_num], [HIDDEN], output_size),
    )


# ---------------------------------------------------------------------------
# Simulator.forward(graph) == EncoderProcesserDecoder(graph)
# ---------------------------------------------------------------------------
def simulator_forward(params, x, edge_attr, senders, receivers):
    n_nodes = x.shape[0]

    # Encoder
    h_v = run_gnn_mlp([x], params["node_enc"], use_ln=True)
    h_e = run_gnn_mlp([edge_attr], params["edge_enc"], use_ln=True)

    # Processor: message_passing_num GraphNet blocks with residuals
    for layer in params["processor"]:
        x_src = jnp.take(h_v, senders, axis=0)      # gather (XLA glue)
        x_dst = jnp.take(h_v, receivers, axis=0)    # gather (XLA glue)
        # e' = e + MLP([x_src, x_dst, e])  -- split-K + fused residual
        h_e = run_gnn_mlp([x_src, x_dst, h_e], layer["edge"],
                          use_ln=True, residual=h_e)

        # scatter-add of edge messages onto receiver nodes (XLA glue)
        agg = jax.ops.segment_sum(h_e, receivers, num_segments=n_nodes)
        # x' = x + MLP([x, agg])  -- split-K + fused residual
        h_v = run_gnn_mlp([h_v, agg], layer["node"],
                          use_ln=True, residual=h_v)

    # Decoder (no LayerNorm, no residual)
    predicted = run_gnn_mlp([h_v], params["decoder"], use_ln=False)
    return predicted


if __name__ == "__main__":
    key = jax.random.PRNGKey(0)
    k_x, k_e, k_s, k_r, k_p = jax.random.split(key, 5)

    # Small synthetic graph consistent with the module's interface.
    N_NODES = 64
    N_EDGES = 128
    NODE_IN = 2
    EDGE_IN = 3          # edge_input_size
    OUT_DIM = 2
    MP_NUM = 2           # message_passing_num

    x = jax.random.normal(k_x, (N_NODES, NODE_IN), jnp.float32)
    edge_attr = jax.random.normal(k_e, (N_EDGES, EDGE_IN), jnp.float32)
    senders = jax.random.randint(k_s, (N_EDGES,), 0, N_NODES)
    receivers = jax.random.randint(k_r, (N_EDGES,), 0, N_NODES)

    params = init_simulator_params(k_p, MP_NUM, NODE_IN, EDGE_IN, OUT_DIM)

    predicted = simulator_forward(params, x, edge_attr, senders, receivers)
    jax.block_until_ready(predicted)
    assert predicted.shape == (N_NODES, OUT_DIM)
    assert bool(jnp.all(jnp.isfinite(predicted)))
    print("KERNEL_OK")
</pallas_src>

<mosaic_0001>
module attributes {stable_mosaic.version = 11 : i64} {
  func.func @_gnn_mlp_kernel(%arg0: i32, %arg1: memref<32x128xf32, #tpu.memory_space<vmem>>, %arg2: memref<128x128xbf16, #tpu.memory_space<vmem>>, %arg3: memref<1x128xf32, #tpu.memory_space<vmem>>, %arg4: memref<128x128xbf16, #tpu.memory_space<vmem>>, %arg5: memref<1x128xf32, #tpu.memory_space<vmem>>, %arg6: memref<128x128xbf16, #tpu.memory_space<vmem>>, %arg7: memref<1x128xf32, #tpu.memory_space<vmem>>, %arg8: memref<1x128xf32, #tpu.memory_space<vmem>>, %arg9: memref<1x128xf32, #tpu.memory_space<vmem>>, %arg10: memref<32x128xf32, #tpu.memory_space<vmem>>) attributes {dimension_semantics = [#tpu.dimension_semantics<parallel>], iteration_bounds = array<i64: 2>, scalar_prefetch = 0 : i64, scratch_operands = 0 : i64, tpu.core_type = #tpu.core_type<tc>, window_params = [{transform_indices = @transform_0, window_bounds = array<i64: 32, 128>}, {pipeline_mode = #tpu.pipeline_mode<synchronous>, transform_indices = @transform_1, window_bounds = array<i64: 128, 128>}, {pipeline_mode = #tpu.pipeline_mode<synchronous>, transform_indices = @transform_2, window_bounds = array<i64: 1, 128>}, {pipeline_mode = #tpu.pipeline_mode<synchronous>, transform_indices = @transform_3, window_bounds = array<i64: 128, 128>}, {pipeline_mode = #tpu.pipeline_mode<synchronous>, transform_indices = @transform_4, window_bounds = array<i64: 1, 128>}, {pipeline_mode = #tpu.pipeline_mode<synchronous>, transform_indices = @transform_5, window_bounds = array<i64: 128, 128>}, {pipeline_mode = #tpu.pipeline_mode<synchronous>, transform_indices = @transform_6, window_bounds = array<i64: 1, 128>}, {pipeline_mode = #tpu.pipeline_mode<synchronous>, transform_indices = @transform_7, window_bounds = array<i64: 1, 128>}, {pipeline_mode = #tpu.pipeline_mode<synchronous>, transform_indices = @transform_8, window_bounds = array<i64: 1, 128>}, {transform_indices = @transform_9, window_bounds = array<i64: 32, 128>}]} {
    %c0 = arith.constant 0 : index
    %c0_0 = arith.constant 0 : index
    %0 = vector.load %arg1[%c0, %c0_0] : memref<32x128xf32, #tpu.memory_space<vmem>>, vector<32x128xf32>
    %1 = arith.truncf %0 : vector<32x128xf32> to vector<32x128xbf16>
    %c0_1 = arith.constant 0 : index
    %c0_2 = arith.constant 0 : index
    %2 = vector.load %arg2[%c0_1, %c0_2] : memref<128x128xbf16, #tpu.memory_space<vmem>>, vector<128x128xbf16>
    %cst = arith.constant dense<0.000000e+00> : vector<32x128xf32>
    %3 = tpu.matmul %1, %2, %cst {dimension_numbers = #tpu.dot_dimension_numbers<[1], [0], [0], [1], [0, 0, 1, 1], [], []>} : vector<32x128xbf16>, vector<128x128xbf16>, vector<32x128xf32> -> vector<32x128xf32>
    %c0_3 = arith.constant 0 : index
    %c0_4 = arith.constant 0 : index
    %4 = vector.load %arg3[%c0_3, %c0_4] : memref<1x128xf32, #tpu.memory_space<vmem>>, vector<1x128xf32>
    %5 = vector.broadcast %4 : vector<1x128xf32> to vector<32x128xf32>
    %6 = arith.addf %3, %5 : vector<32x128xf32>
    %cst_5 = arith.constant 0.000000e+00 : f32
    %7 = vector.broadcast %cst_5 : f32 to vector<32x128xf32>
    %8 = arith.maximumf %6, %7 : vector<32x128xf32>
    %9 = arith.truncf %8 : vector<32x128xf32> to vector<32x128xbf16>
    %c0_6 = arith.constant 0 : index
    %c0_7 = arith.constant 0 : index
    %10 = vector.load %arg4[%c0_6, %c0_7] : memref<128x128xbf16, #tpu.memory_space<vmem>>, vector<128x128xbf16>
    %cst_8 = arith.constant dense<0.000000e+00> : vector<32x128xf32>
    %11 = tpu.matmul %9, %10, %cst_8 {dimension_numbers = #tpu.dot_dimension_numbers<[1], [0], [0], [1], [0, 0, 1, 1], [], []>} : vector<32x128xbf16>, vector<128x128xbf16>, vector<32x128xf32> -> vector<32x128xf32>
    %c0_9 = arith.constant 0 : index
    %c0_10 = arith.constant 0 : index
    %12 = vector.load %arg5[%c0_9, %c0_10] : memref<1x128xf32, #tpu.memory_space<vmem>>, vector<1x128xf32>
    %13 = vector.broadcast %12 : vector<1x128xf32> to vector<32x128xf32>
    %14 = arith.addf %11, %13 : vector<32x128xf32>
    %cst_11 = arith.constant 0.000000e+00 : f32
    %15 = vector.broadcast %cst_11 : f32 to vector<32x128xf32>
    %16 = arith.maximumf %14, %15 : vector<32x128xf32>
    %17 = arith.truncf %16 : vector<32x128xf32> to vector<32x128xbf16>
    %c0_12 = arith.constant 0 : index
    %c0_13 = arith.constant 0 : index
    %18 = vector.load %arg6[%c0_12, %c0_13] : memref<128x128xbf16, #tpu.memory_space<vmem>>, vector<128x128xbf16>
    %cst_14 = arith.constant dense<0.000000e+00> : vector<32x128xf32>
    %19 = tpu.matmul %17, %18, %cst_14 {dimension_numbers = #tpu.dot_dimension_numbers<[1], [0], [0], [1], [0, 0, 1, 1], [], []>} : vector<32x128xbf16>, vector<128x128xbf16>, vector<32x128xf32> -> vector<32x128xf32>
    %c0_15 = arith.constant 0 : index
    %c0_16 = arith.constant 0 : index
    %20 = vector.load %arg7[%c0_15, %c0_16] : memref<1x128xf32, #tpu.memory_space<vmem>>, vector<1x128xf32>
    %21 = vector.broadcast %20 : vector<1x128xf32> to vector<32x128xf32>
    %22 = arith.addf %19, %21 : vector<32x128xf32>
    %cst_17 = arith.constant dense<0.000000e+00> : vector<32xf32>
    %23 = vector.multi_reduction <add>, %22, %cst_17 [1] : vector<32x128xf32> to vector<32xf32>
    %24 = vector.shape_cast %23 : vector<32xf32> to vector<32x1xf32>
    %cst_18 = arith.constant 1.280000e+02 : f32
    %25 = vector.broadcast %cst_18 : f32 to vector<32x1xf32>
    %26 = arith.divf %24, %25 : vector<32x1xf32>
    %27 = vector.broadcast %26 : vector<32x1xf32> to vector<32x128xf32>
    %28 = arith.subf %22, %27 : vector<32x128xf32>
    %29 = arith.mulf %28, %28 : vector<32x128xf32>
    %cst_19 = arith.constant dense<0.000000e+00> : vector<32xf32>
    %30 = vector.multi_reduction <add>, %29, %cst_19 [1] : vector<32x128xf32> to vector<32xf32>
    %31 = vector.shape_cast %30 : vector<32xf32> to vector<32x1xf32>
    %cst_20 = arith.constant 1.280000e+02 : f32
    %32 = vector.broadcast %cst_20 : f32 to vector<32x1xf32>
    %33 = arith.divf %31, %32 : vector<32x1xf32>
    %34 = vector.broadcast %26 : vector<32x1xf32> to vector<32x128xf32>
    %35 = arith.subf %22, %34 : vector<32x128xf32>
    %cst_21 = arith.constant 9.99999974E-6 : f32
    %36 = vector.broadcast %cst_21 : f32 to vector<32x1xf32>
    %37 = arith.addf %33, %36 : vector<32x1xf32>
    %38 = math.rsqrt %37 : vector<32x1xf32>
    %39 = vector.broadcast %38 : vector<32x1xf32> to vector<32x128xf32>
    %40 = arith.mulf %35, %39 : vector<32x128xf32>
    %c0_22 = arith.constant 0 : index
    %c0_23 = arith.constant 0 : index
    %41 = vector.load %arg8[%c0_22, %c0_23] : memref<1x128xf32, #tpu.memory_space<vmem>>, vector<1x128xf32>
    %42 = vector.broadcast %41 : vector<1x128xf32> to vector<32x128xf32>
    %43 = arith.mulf %40, %42 : vector<32x128xf32>
    %c0_24 = arith.constant 0 : index
    %c0_25 = arith.constant 0 : index
    %44 = vector.load %arg9[%c0_24, %c0_25] : memref<1x128xf32, #tpu.memory_space<vmem>>, vector<1x128xf32>
    %45 = vector.broadcast %44 : vector<1x128xf32> to vector<32x128xf32>
    %46 = arith.addf %43, %45 : vector<32x128xf32>
    %c0_26 = arith.constant 0 : index
    %c0_27 = arith.constant 0 : index
    %47 = vector.load %arg10[%c0_26, %c0_27] : memref<32x128xf32, #tpu.memory_space<vmem>>, vector<32x128xf32>
    tpu.vector_store %arg10[%c0_26, %c0_27], %46 {strides = array<i32>} : memref<32x128xf32, #tpu.memory_space<vmem>>, vector<32x128xf32>,
    return
  }
  func.func @transform_0(%arg0: i32) -> (i32, i32) {
    %c0_i32 = arith.constant 0 : i32
    %c0_i32_0 = arith.constant 0 : i32
    return %arg0, %c0_i32 : i32, i32
  }
  func.func @transform_1(%arg0: i32) -> (i32, i32) {
    %c0_i32 = arith.constant 0 : i32
    %c0_i32_0 = arith.constant 0 : i32
    %c0_i32_1 = arith.constant 0 : i32
    return %c0_i32, %c0_i32_0 : i32, i32
  }
  func.func @transform_2(%arg0: i32) -> (i32, i32) {
    %c0_i32 = arith.constant 0 : i32
    %c0_i32_0 = arith.constant 0 : i32
    %c0_i32_1 = arith.constant 0 : i32
    return %c0_i32, %c0_i32_0 : i32, i32
  }
  func.func @transform_3(%arg0: i32) -> (i32, i32) {
    %c0_i32 = arith.constant 0 : i32
    %c0_i32_0 = arith.constant 0 : i32
    %c0_i32_1 = arith.constant 0 : i32
    return %c0_i32, %c0_i32_0 : i32, i32
  }
  func.func @transform_4(%arg0: i32) -> (i32, i32) {
    %c0_i32 = arith.constant 0 : i32
    %c0_i32_0 = arith.constant 0 : i32
    %c0_i32_1 = arith.constant 0 : i32
    return %c0_i32, %c0_i32_0 : i32, i32
  }
  func.func @transform_5(%arg0: i32) -> (i32, i32) {
    %c0_i32 = arith.constant 0 : i32
    %c0_i32_0 = arith.constant 0 : i32
    %c0_i32_1 = arith.constant 0 : i32
    return %c0_i32, %c0_i32_0 : i32, i32
  }
  func.func @transform_6(%arg0: i32) -> (i32, i32) {
    %c0_i32 = arith.constant 0 : i32
    %c0_i32_0 = arith.constant 0 : i32
    %c0_i32_1 = arith.constant 0 : i32
    return %c0_i32, %c0_i32_0 : i32, i32
  }
  func.func @transform_7(%arg0: i32) -> (i32, i32) {
    %c0_i32 = arith.constant 0 : i32
    %c0_i32_0 = arith.constant 0 : i32
    %c0_i32_1 = arith.constant 0 : i32
    return %c0_i32, %c0_i32_0 : i32, i32
  }
  func.func @transform_8(%arg0: i32) -> (i32, i32) {
    %c0_i32 = arith.constant 0 : i32
    %c0_i32_0 = arith.constant 0 : i32
    %c0_i32_1 = arith.constant 0 : i32
    return %c0_i32, %c0_i32_0 : i32, i32
  }
  func.func @transform_9(%arg0: i32) -> (i32, i32) {
    %c0_i32 = arith.constant 0 : i32
    %c0_i32_0 = arith.constant 0 : i32
    return %arg0, %c0_i32 : i32, i32
  }
}

</mosaic_0001>

<llo_original>
// kernel: tpu_custom_call.1
$region0: #{tpu_custom_call.1}
  #allocation0 [shape = 'u32[]', space=smem, size = 0x4, offset = 0x4, fixed_abs, tag = 'smem constant byte address 0x4 - core index']
  #allocation1 [shape = 'u32[72,128]{1,0:T(1,128)}', space=vmem, size = 0x9000, scoped, tag = 'internal scratch']
  %s0 = inlined_call_operand.hbm [shape: f32[64,128], index: 0, kind: input, shape index: {}]
  %s1 = inlined_call_operand.hbm [shape: bf16[128,128], index: 1, kind: input, shape index: {}]
  %s2 = inlined_call_operand.vmem [shape: f32[1,128], index: 2, kind: input, shape index: {}]
  %s3 = inlined_call_operand.hbm [shape: bf16[128,128], index: 3, kind: input, shape index: {}]
  %s4 = inlined_call_operand.vmem [shape: f32[1,128], index: 4, kind: input, shape index: {}]
  %s5 = inlined_call_operand.hbm [shape: bf16[128,128], index: 5, kind: input, shape index: {}]
  %s6 = inlined_call_operand.vmem [shape: f32[1,128], index: 6, kind: input, shape index: {}]
  %s7 = inlined_call_operand.vmem [shape: f32[1,128], index: 7, kind: input, shape index: {}]
  %s8 = inlined_call_operand.vmem [shape: f32[1,128], index: 8, kind: input, shape index: {}]
  %s9 = inlined_call_operand.hbm [shape: f32[64,128], index: 9, kind: output, shape index: {}]
  %s10 = sld [smem:[#allocation0]]
  $region85: #{tpu_custom_call.1} parent=0
    _
  %s12 = ssub.s32 1, %s10
  %s13 = scalar_select 0, %s12, %s10
  $region1: #{tpu_custom_call.1} parent=0
    #allocation2 [shape = 'u8[32768]{0}', space=vmem, size = 0x8000, scoped, tag = 'input window, operand 0']
    #allocation3 [shape = 's32[2]{0}', space=sflag, size = 0x8, scoped, tag = 'scoped memory for tpu_custom_call.1']
    #allocation4 [shape = 's32[2]{0}', space=sflag, size = 0x8, scoped, tag = 'scoped memory for tpu_custom_call.1']
    #allocation5 [shape = 'u8[32768]{0}', space=vmem, size = 0x8000, scoped, tag = 'input window, operand 1, single buffered']
    #allocation6 [shape = 's32[1]{0}', space=sflag, size = 0x4, scoped, tag = 'scoped memory for tpu_custom_call.1']
    #allocation7 [shape = 'u8[32768]{0}', space=vmem, size = 0x8000, scoped, tag = 'input window, operand 3, single buffered']
    #allocation8 [shape = 'u8[32768]{0}', space=vmem, size = 0x8000, scoped, tag = 'input window, operand 5, single buffered']
    #allocation9 [shape = 's32[1]{0}', space=sflag, size = 0x4, scoped, tag = 'scoped memory for tpu_custom_call.1']
    #allocation10 [shape = 'u8[32768]{0}', space=vmem, size = 0x8000, scoped, tag = 'output window, operand 0']
    %14 = vsyncpa [#allocation3], 0
    %s15 = scalar_lea.sflag [#allocation3], 1
    %16 = vsyncpa %s15, 0
    %17 = vsyncpa [#allocation6], 0
    %18 = vsyncpa [#allocation9], 0
    %19 = vsyncpa [#allocation4], 0
    %s20 = scalar_lea.sflag [#allocation4], 1
    %21 = vsyncpa %s20, 0
    loop: start=0, step=1, limit=4
    $region2: #{tpu_custom_call.1} parent=1 // loop_pre_header
      _
    $region3: #{tpu_custom_call.1} parent=1 // loop_header
      %s23 = sphi 0, %s27
      %p24 = scmp.ge.s32.totalorder %s23, 4
      %s33 = sphi 0, %s35
      %s36 = sphi 0, %s33
      %s37 = sphi 0, %s36
      %s53 = sphi 0, %s37
      %s57 = sphi 0, %s57
      %s59 = sphi 0, %s57
      %s60 = sphi 0, %s59
      %s74 = sphi 0, %s60
      %s78 = sphi 0, %s78
      %s80 = sphi 0, %s78
      %s81 = sphi 0, %s80
      %s95 = sphi 0, %s81
      %s99 = sphi 0, %s99
      %s101 = sphi 0, %s99
      %s102 = sphi 0, %s101
      %s116 = sphi 0, %s102
      %s120 = sphi 0, %s120
      %s122 = sphi 0, %s120
      %s123 = sphi 0, %s122
      %s137 = sphi 0, %s123
      %s141 = sphi 0, %s141
      %s143 = sphi 0, %s141
      %s144 = sphi 0, %s143
      %s158 = sphi 0, %s144
      %s162 = sphi 0, %s162
      %s164 = sphi 0, %s162
      %s165 = sphi 0, %s164
      %s179 = sphi 0, %s165
      %s183 = sphi 0, %s183
      %s185 = sphi 0, %s183
      %s186 = sphi 0, %s185
      %s200 = sphi 0, %s186
      %s204 = sphi 0, %s204
      %s206 = sphi 0, %s204
      %s207 = sphi 0, %s206
      %s221 = sphi 0, %s207
      %s227 = sphi 0, %s229
      %s230 = sphi 0, %s227
      %s231 = sphi 0, %s230
      %s247 = sphi 0, %s231
    $region4: #{tpu_custom_call.1} parent=1 // loop_header_branch
      %26 = sbr.rel (%p24) target = $region8
    $region5: #{tpu_custom_call.1} parent=1 // loop_body
      %s28 = ssub.s32 %s23, 1
      %s29 = ssub.s32 %s23, 2
      %s30 = sadd.s32 %s23, 1
      %s31 = ssub.s32 %s23, %s30
      %p32 = scmp.eq.s32.totalorder %s31, 0
      %s34 = sadd.s32 %s33, 1
      %s35 = scalar_select %p32, %s33, %s34
      %p38 = pneg %p32
      %p39 = scmp.eq.s32.totalorder %s23, 1
      %p40 = por %p38, %p39
      %p41 = scmp.ne.s32.totalorder %s33, %s36
      %p42 = scmp.eq.s32.totalorder %s23, 0
      %p43 = por %p41, %p42
      %p44 = scmp.ne.s32.totalorder %s33, %s36
      %p45 = scmp.eq.s32.totalorder %s28, 1
      %p46 = por %p44, %p45
      %p47 = scmp.ne.s32.totalorder %s36, %s37
      %p48 = scmp.eq.s32.totalorder %s28, 0
      %p49 = por %p47, %p48
      %p50 = scmp.ne.s32.totalorder %s36, %s37
      %p51 = scmp.eq.s32.totalorder %s29, 1
      %p52 = por %p50, %p51
      %p54 = scmp.ne.s32.totalorder %s37, %s53
      %p55 = scmp.eq.s32.totalorder %s29, 0
      %p56 = por %p54, %p55
      %s58 = sadd.s32 %s57, 1
      %p61 = scmp.eq.s32.totalorder %s23, 1
      %p62 = scmp.ne.s32.totalorder %s57, %s59
      %p63 = scmp.eq.s32.totalorder %s23, 0
      %p64 = por %p62, %p63
      %p65 = scmp.ne.s32.totalorder %s57, %s59
      %p66 = scmp.eq.s32.totalorder %s28, 1
      %p67 = por %p65, %p66
      %p68 = scmp.ne.s32.totalorder %s59, %s60
      %p69 = scmp.eq.s32.totalorder %s28, 0
      %p70 = por %p68, %p69
      %p71 = scmp.ne.s32.totalorder %s59, %s60
      %p72 = scmp.eq.s32.totalorder %s29, 1
      %p73 = por %p71, %p72
      %p75 = scmp.ne.s32.totalorder %s60, %s74
      %p76 = scmp.eq.s32.totalorder %s29, 0
      %p77 = por %p75, %p76
      %s79 = sadd.s32 %s78, 1
      %p82 = scmp.eq.s32.totalorder %s23, 1
      %p83 = scmp.ne.s32.totalorder %s78, %s80
      %p84 = scmp.eq.s32.totalorder %s23, 0
      %p85 = por %p83, %p84
      %p86 = scmp.ne.s32.totalorder %s78, %s80
      %p87 = scmp.eq.s32.totalorder %s28, 1
      %p88 = por %p86, %p87
      %p89 = scmp.ne.s32.totalorder %s80, %s81
      %p90 = scmp.eq.s32.totalorder %s28, 0
      %p91 = por %p89, %p90
      %p92 = scmp.ne.s32.totalorder %s80, %s81
      %p93 = scmp.eq.s32.totalorder %s29, 1
      %p94 = por %p92, %p93
      %p96 = scmp.ne.s32.totalorder %s81, %s95
      %p97 = scmp.eq.s32.totalorder %s29, 0
      %p98 = por %p96, %p97
      %s100 = sadd.s32 %s99, 1
      %p103 = scmp.eq.s32.totalorder %s23, 1
      %p104 = scmp.ne.s32.totalorder %s99, %s101
      %p105 = scmp.eq.s32.totalorder %s23, 0
      %p106 = por %p104, %p105
      %p107 = scmp.ne.s32.totalorder %s99, %s101
      %p108 = scmp.eq.s32.totalorder %s28, 1
      %p109 = por %p107, %p108
      %p110 = scmp.ne.s32.totalorder %s101, %s102
      %p111 = scmp.eq.s32.totalorder %s28, 0
      %p112 = por %p110, %p111
      %p113 = scmp.ne.s32.totalorder %s101, %s102
      %p114 = scmp.eq.s32.totalorder %s29, 1
      %p115 = por %p113, %p114
      %p117 = scmp.ne.s32.totalorder %s102, %s116
      %p118 = scmp.eq.s32.totalorder %s29, 0
      %p119 = por %p117, %p118
      %s121 = sadd.s32 %s120, 1
      %p124 = scmp.eq.s32.totalorder %s23, 1
      %p125 = scmp.ne.s32.totalorder %s120, %s122
      %p126 = scmp.eq.s32.totalorder %s23, 0
      %p127 = por %p125, %p126
      %p128 = scmp.ne.s32.totalorder %s120, %s122
      %p129 = scmp.eq.s32.totalorder %s28, 1
      %p130 = por %p128, %p129
      %p131 = scmp.ne.s32.totalorder %s122, %s123
      %p132 = scmp.eq.s32.totalorder %s28, 0
      %p133 = por %p131, %p132
      %p134 = scmp.ne.s32.totalorder %s122, %s123
      %p135 = scmp.eq.s32.totalorder %s29, 1
      %p136 = por %p134, %p135
      %p138 = scmp.ne.s32.totalorder %s123, %s137
      %p139 = scmp.eq.s32.totalorder %s29, 0
      %p140 = por %p138, %p139
      %s142 = sadd.s32 %s141, 1
      %p145 = scmp.eq.s32.totalorder %s23, 1
      %p146 = scmp.ne.s32.totalorder %s141, %s143
      %p147 = scmp.eq.s32.totalorder %s23, 0
      %p148 = por %p146, %p147
      %p149 = scmp.ne.s32.totalorder %s141, %s143
      %p150 = scmp.eq.s32.totalorder %s28, 1
      %p151 = por %p149, %p150
      %p152 = scmp.ne.s32.totalorder %s143, %s144
      %p153 = scmp.eq.s32.totalorder %s28, 0
      %p154 = por %p152, %p153
      %p155 = scmp.ne.s32.totalorder %s143, %s144
      %p156 = scmp.eq.s32.totalorder %s29, 1
      %p157 = por %p155, %p156
      %p159 = scmp.ne.s32.totalorder %s144, %s158
      %p160 = scmp.eq.s32.totalorder %s29, 0
      %p161 = por %p159, %p160
      %s163 = sadd.s32 %s162, 1
      %p166 = scmp.eq.s32.totalorder %s23, 1
      %p167 = scmp.ne.s32.totalorder %s162, %s164
      %p168 = scmp.eq.s32.totalorder %s23, 0
      %p169 = por %p167, %p168
      %p170 = scmp.ne.s32.totalorder %s162, %s164
      %p171 = scmp.eq.s32.totalorder %s28, 1
      %p172 = por %p170, %p171
      %p173 = scmp.ne.s32.totalorder %s164, %s165
      %p174 = scmp.eq.s32.totalorder %s28, 0
      %p175 = por %p173, %p174
      %p176 = scmp.ne.s32.totalorder %s164, %s165
      %p177 = scmp.eq.s32.totalorder %s29, 1
      %p178 = por %p176, %p177
      %p180 = scmp.ne.s32.totalorder %s165, %s179
      %p181 = scmp.eq.s32.totalorder %s29, 0
      %p182 = por %p180, %p181
      %s184 = sadd.s32 %s183, 1
      %p187 = scmp.eq.s32.totalorder %s23, 1
      %p188 = scmp.ne.s32.totalorder %s183, %s185
      %p189 = scmp.eq.s32.totalorder %s23, 0
      %p190 = por %p188, %p189
      %p191 = scmp.ne.s32.totalorder %s183, %s185
      %p192 = scmp.eq.s32.totalorder %s28, 1
      %p193 = por %p191, %p192
      %p194 = scmp.ne.s32.totalorder %s185, %s186
      %p195 = scmp.eq.s32.totalorder %s28, 0
      %p196 = por %p194, %p195
      %p197 = scmp.ne.s32.totalorder %s185, %s186
      %p198 = scmp.eq.s32.totalorder %s29, 1
      %p199 = por %p197, %p198
      %p201 = scmp.ne.s32.totalorder %s186, %s200
      %p202 = scmp.eq.s32.totalorder %s29, 0
      %p203 = por %p201, %p202
      %s205 = sadd.s32 %s204, 1
      %p208 = scmp.eq.s32.totalorder %s23, 1
      %p209 = scmp.ne.s32.totalorder %s204, %s206
      %p210 = scmp.eq.s32.totalorder %s23, 0
      %p211 = por %p209, %p210
      %p212 = scmp.ne.s32.totalorder %s204, %s206
      %p213 = scmp.eq.s32.totalorder %s28, 1
      %p214 = por %p212, %p213
      %p215 = scmp.ne.s32.totalorder %s206, %s207
      %p216 = scmp.eq.s32.totalorder %s28, 0
      %p217 = por %p215, %p216
      %p218 = scmp.ne.s32.totalorder %s206, %s207
      %p219 = scmp.eq.s32.totalorder %s29, 1
      %p220 = por %p218, %p219
      %p222 = scmp.ne.s32.totalorder %s207, %s221
      %p223 = scmp.eq.s32.totalorder %s29, 0
      %p224 = por %p222, %p223
      %s225 = ssub.s32 %s23, %s30
      %p226 = scmp.eq.s32.totalorder %s225, 0
      %s228 = sadd.s32 %s227, 1
      %s229 = scalar_select %p226, %s227, %s228
      %p232 = pneg %p226
      %p233 = scmp.eq.s32.totalorder %s23, 1
      %p234 = por %p232, %p233
      %p235 = scmp.ne.s32.totalorder %s227, %s230
      %p236 = scmp.eq.s32.totalorder %s23, 0
      %p237 = por %p235, %p236
      %p238 = scmp.ne.s32.totalorder %s227, %s230
      %p239 = scmp.eq.s32.totalorder %s28, 1
      %p240 = por %p238, %p239
      %p241 = scmp.ne.s32.totalorder %s230, %s231
      %p242 = scmp.eq.s32.totalorder %s28, 0
      %p243 = por %p241, %p242
      %p244 = scmp.ne.s32.totalorder %s230, %s231
      %p245 = scmp.eq.s32.totalorder %s29, 1
      %p246 = por %p244, %p245
      %p248 = scmp.ne.s32.totalorder %s231, %s247
      %p249 = scmp.eq.s32.totalorder %s29, 0
      %p250 = por %p248, %p249
      %p251 = scmp.le.s32.totalorder 1, %s23
      %p252 = scmp.lt.s32.totalorder %s23, 3
      %p253 = pnand %p251, %p252
      %p254 = pneg %p253
      // Predicated region
      $region9: #{tpu_custom_call.1} parent=5 // pred_check
        _
      $region10: #{tpu_custom_call.1} parent=5 // pred_check_branch
        %256 = sbr.rel (%p253) target = $region12
      $region11: #{tpu_custom_call.1} parent=5 // pred_region
        %s257 = ssub.s32 %s23, 1
        // Predicated region
        $region13: #{tpu_custom_call.1} parent=11 // pred_check
          %p258 = pneg %p70
        $region14: #{tpu_custom_call.1} parent=11 // pred_check_branch
          %260 = sbr.rel (%p258) target = $region16
        $region15: #{tpu_custom_call.1} parent=11 // pred_region
          %262 = vsyncadd [#allocation6], 0
          %s263 = sshll.u32 %s1, 4
          %s264 = int_to_ptr.hbm [resolvable:$true] %s263
          %s265 = sshll.u32 [#allocation5], 4
          %s266 = int_to_ptr.vmem [resolvable:$true] %s265
          %271 = dma.hbm_to_vmem [thread:$0]  %s264, 1024, %s266, [#allocation6], 64, 64, 4
        $region16: #{tpu_custom_call.1} parent=11 // pred_fallthru
          _
        // Predicated region
        $region17: #{tpu_custom_call.1} parent=11 // pred_check
          %p272 = pneg %p91
        $region18: #{tpu_custom_call.1} parent=11 // pred_check_branch
          %274 = sbr.rel (%p272) target = $region20
        $region19: #{tpu_custom_call.1} parent=11 // pred_region
          _
        $region20: #{tpu_custom_call.1} parent=11 // pred_fallthru
          _
        // Predicated region
        $region21: #{tpu_custom_call.1} parent=11 // pred_check
          %p275 = pneg %p112
        $region22: #{tpu_custom_call.1} parent=11 // pred_check_branch
          %277 = sbr.rel (%p275) target = $region24
        $region23: #{tpu_custom_call.1} parent=11 // pred_region
          %279 = vsyncadd [#allocation6], 0
          %s280 = sshll.u32 %s3, 4
          %s281 = int_to_ptr.hbm [resolvable:$true] %s280
          %s282 = sshll.u32 [#allocation7], 4
          %s283 = int_to_ptr.vmem [resolvable:$true] %s282
          %288 = dma.hbm_to_vmem [thread:$0]  %s281, 1024, %s283, [#allocation6], 64, 64, 4
        $region24: #{tpu_custom_call.1} parent=11 // pred_fallthru
          _
        // Predicated region
        $region25: #{tpu_custom_call.1} parent=11 // pred_check
          %p289 = pneg %p133
        $region26: #{tpu_custom_call.1} parent=11 // pred_check_branch
          %291 = sbr.rel (%p289) target = $region28
        $region27: #{tpu_custom_call.1} parent=11 // pred_region
          _
        $region28: #{tpu_custom_call.1} parent=11 // pred_fallthru
          _
        // Predicated region
        $region29: #{tpu_custom_call.1} parent=11 // pred_check
          %p292 = pneg %p154
        $region30: #{tpu_custom_call.1} parent=11 // pred_check_branch
          %294 = sbr.rel (%p292) target = $region32
        $region31: #{tpu_custom_call.1} parent=11 // pred_region
          %296 = vsyncadd [#allocation9], 0
          %s297 = sshll.u32 %s5, 4
          %s298 = int_to_ptr.hbm [resolvable:$true] %s297
          %s299 = sshll.u32 [#allocation8], 4
          %s300 = int_to_ptr.vmem [resolvable:$true] %s299
          %305 = dma.hbm_to_vmem [thread:$0]  %s298, 1024, %s300, [#allocation9], 64, 64, 4
        $region32: #{tpu_custom_call.1} parent=11 // pred_fallthru
          _
        // Predicated region
        $region33: #{tpu_custom_call.1} parent=11 // pred_check
          %p306 = pneg %p175
        $region34: #{tpu_custom_call.1} parent=11 // pred_check_branch
          %308 = sbr.rel (%p306) target = $region36
        $region35: #{tpu_custom_call.1} parent=11 // pred_region
          _
        $region36: #{tpu_custom_call.1} parent=11 // pred_fallthru
          _
        // Predicated region
        $region37: #{tpu_custom_call.1} parent=11 // pred_check
          %p309 = pneg %p196
        $region38: #{tpu_custom_call.1} parent=11 // pred_check_branch
          %311 = sbr.rel (%p309) target = $region40
        $region39: #{tpu_custom_call.1} parent=11 // pred_region
          _
        $region40: #{tpu_custom_call.1} parent=11 // pred_fallthru
          _
        // Predicated region
        $region41: #{tpu_custom_call.1} parent=11 // pred_check
          %p312 = pneg %p217
        $region42: #{tpu_custom_call.1} parent=11 // pred_check_branch
          %314 = sbr.rel (%p312) target = $region44
        $region43: #{tpu_custom_call.1} parent=11 // pred_region
          _
        $region44: #{tpu_custom_call.1} parent=11 // pred_fallthru
          _
      $region12: #{tpu_custom_call.1} parent=5 // pred_fallthru
        _
      %p315 = scmp.lt.s32.totalorder %s23, 2
      // Predicated region
      $region45: #{tpu_custom_call.1} parent=5 // pred_check
        %p316 = pneg %p315
      $region46: #{tpu_custom_call.1} parent=5 // pred_check_branch
        %318 = sbr.rel (%p316) target = $region48
      $region47: #{tpu_custom_call.1} parent=5 // pred_region
        // Predicated region
        $region49: #{tpu_custom_call.1} parent=47 // pred_check
          %p319 = pneg %p43
        $region50: #{tpu_custom_call.1} parent=47 // pred_check_branch
          %321 = sbr.rel (%p319) target = $region52
        $region51: #{tpu_custom_call.1} parent=47 // pred_region
          %s322 = sand.u32 %s33, 1
          %s323 = scalar_lea.sflag [#allocation3], %s322
          %s324 = sand.u32 %s33, 1
          %s325 = smul.addr %s324, 32
          %s326 = scalar_lea.vmem [#allocation2], %s325
          %s327 = smul.u32 4, %s23
          %329 = vsyncadd %s323, 0
          %s330 = smul.addr %s327, 8
          %s331 = scalar_lea.hbm %s0, %s330
          %s332 = sshll.u32 %s331, 4
          %s333 = int_to_ptr.hbm [resolvable:$true] %s332
          %s334 = sshll.u32 %s326, 4
          %s335 = int_to_ptr.vmem [resolvable:$true] %s334
          %340 = dma.hbm_to_vmem [thread:$0]  %s333, 512, %s335, %s323, 128, 128, 8
        $region52: #{tpu_custom_call.1} parent=47 // pred_fallthru
          _
      $region48: #{tpu_custom_call.1} parent=5 // pred_fallthru
        _
      %p341 = scmp.le.s32.totalorder 1, %s23
      %p342 = scmp.lt.s32.totalorder %s23, 3
      %p343 = pnand %p341, %p342
      %p344 = pneg %p343
      // Predicated region
      $region53: #{tpu_custom_call.1} parent=5 // pred_check
        _
      $region54: #{tpu_custom_call.1} parent=5 // pred_check_branch
        %346 = sbr.rel (%p343) target = $region56
      $region55: #{tpu_custom_call.1} parent=5 // pred_region
        %s347 = ssub.s32 %s23, 1
        %s348 = sand.u32 %s36, 1
        %s349 = scalar_lea.sflag [#allocation3], %s348
        %s350 = sand.u32 %s36, 1
        %s351 = smul.addr %s350, 32
        %s352 = scalar_lea.vmem [#allocation2], %s351
        // Predicated region
        $region57: #{tpu_custom_call.1} parent=55 // pred_check
          %p353 = pneg %p49
        $region58: #{tpu_custom_call.1} parent=55 // pred_check_branch
          %355 = sbr.rel (%p353) target = $region60
        $region59: #{tpu_custom_call.1} parent=55 // pred_region
          %357 = dma.done %s349, 512
        $region60: #{tpu_custom_call.1} parent=55 // pred_fallthru
          _
        // Predicated region
        $region61: #{tpu_custom_call.1} parent=55 // pred_check
          %p358 = pneg %p70
        $region62: #{tpu_custom_call.1} parent=55 // pred_check_branch
          %360 = sbr.rel (%p358) target = $region64
        $region63: #{tpu_custom_call.1} parent=55 // pred_region
          %362 = dma.done [#allocation6], 1024
        $region64: #{tpu_custom_call.1} parent=55 // pred_fallthru
          _
        // Predicated region
        $region65: #{tpu_custom_call.1} parent=55 // pred_check
          %p363 = pneg %p112
        $region66: #{tpu_custom_call.1} parent=55 // pred_check_branch
          %365 = sbr.rel (%p363) target = $region68
        $region67: #{tpu_custom_call.1} parent=55 // pred_region
          %367 = dma.done [#allocation6], 1024
        $region68: #{tpu_custom_call.1} parent=55 // pred_fallthru
          _
        // Predicated region
        $region69: #{tpu_custom_call.1} parent=55 // pred_check
          %p368 = pneg %p154
        $region70: #{tpu_custom_call.1} parent=55 // pred_check_branch
          %370 = sbr.rel (%p368) target = $region72
        $region71: #{tpu_custom_call.1} parent=55 // pred_region
          %372 = dma.done [#allocation9], 1024
        $region72: #{tpu_custom_call.1} parent=55 // pred_fallthru
          _
        %s373 = sand.u32 %s36, 1
        %s374 = scalar_lea.sflag [#allocation3], %s373
        %s375 = sand.u32 %s36, 1
        %s376 = smul.addr %s375, 32
        %s377 = scalar_lea.vmem [#allocation2], %s376
        %p378 = pneg %p49
        %p379 = pneg %p46
        %p380 = pneg %p70
        %p381 = pneg %p67
        %p382 = pneg %p91
        %p383 = pneg %p88
        %p384 = pneg %p112
        %p385 = pneg %p109
        %p386 = pneg %p133
        %p387 = pneg %p130
        %p388 = pneg %p154
        %p389 = pneg %p151
        %p390 = pneg %p175
        %p391 = pneg %p172
        %p392 = pneg %p196
        %p393 = pneg %p193
        %p394 = pneg %p217
        %p395 = pneg %p214
        %p396 = pneg %p243
        %p397 = pneg %p240
        %s398 = sand.u32 %s230, 1
        %s399 = scalar_lea.sflag [#allocation4], %s398
        %s400 = sand.u32 %s230, 1
        %s401 = smul.addr %s400, 32
        %s402 = scalar_lea.vmem [#allocation10], %s401
        %s403 = smul.u32 4, %s28
        %s404 = smul.u32 4, %s28
        %v405 = vld [vmem:[%s352] sm:$0xff]
        %v406 = vld [vmem:[%s352 + $0x8] sm:$0xff]
        %v407 = vld [vmem:[%s352 + $0x10] sm:$0xff]
        %v408 = vld [vmem:[%s352 + $0x18] sm:$0xff]
        %v409 = vpack.c.bf16 %v406, %v405
        %v410 = vpack.c.bf16 %v408, %v407
        %v411 = vld [vmem:[#allocation5] sm:$0xf]
        %v412 = vld [vmem:[#allocation5 + $0x4] sm:$0xf]
        %v413 = vld [vmem:[#allocation5 + $0x8] sm:$0xf]
        %v414 = vld [vmem:[#allocation5 + $0xc] sm:$0xf]
        %v415 = vld [vmem:[#allocation5 + $0x10] sm:$0xf]
        %v416 = vld [vmem:[#allocation5 + $0x14] sm:$0xf]
        %v417 = vld [vmem:[#allocation5 + $0x18] sm:$0xf]
        %v418 = vld [vmem:[#allocation5 + $0x1c] sm:$0xf]
        %v419 = vld [vmem:[#allocation5 + $0x20] sm:$0xf]
        %v420 = vld [vmem:[#allocation5 + $0x24] sm:$0xf]
        %v421 = vld [vmem:[#allocation5 + $0x28] sm:$0xf]
        %v422 = vld [vmem:[#allocation5 + $0x2c] sm:$0xf]
        %v423 = vld [vmem:[#allocation5 + $0x30] sm:$0xf]
        %v424 = vld [vmem:[#allocation5 + $0x34] sm:$0xf]
        %v425 = vld [vmem:[#allocation5 + $0x38] sm:$0xf]
        %v426 = vld [vmem:[#allocation5 + $0x3c] sm:$0xf]
        %v427 = vld [vmem:[%s2] sm:$0x1]
        %v429 = vperm.slane %v427, 0
        %v447 = vunpack.c.l.b16 %v411
        %v448 = vunpack.c.l.b16 %v412
        %v449 = vunpack.c.l.b16 %v413
        %v450 = vunpack.c.l.b16 %v414
        %v451 = vunpack.c.l.b16 %v415
        %v452 = vunpack.c.l.b16 %v416
        %v453 = vunpack.c.l.b16 %v417
        %v454 = vunpack.c.l.b16 %v418
        %v455 = vunpack.c.l.b16 %v419
        %v456 = vunpack.c.l.b16 %v420
        %v457 = vunpack.c.l.b16 %v421
        %v458 = vunpack.c.l.b16 %v422
        %v459 = vunpack.c.l.b16 %v423
        %v460 = vunpack.c.l.b16 %v424
        %v461 = vunpack.c.l.b16 %v425
        %v462 = vunpack.c.l.b16 %v426
        %v463 = vpack.c.b16 %v448, %v447
        %v464 = vpack.c.b16 %v450, %v449
        %v465 = vpack.c.b16 %v452, %v451
        %v466 = vpack.c.b16 %v454, %v453
        %v467 = vpack.c.b16 %v456, %v455
        %v468 = vpack.c.b16 %v458, %v457
        %v469 = vpack.c.b16 %v460, %v459
        %v470 = vpack.c.b16 %v462, %v461
        %479 = vmatpush.bf16.msra.mxu0 %v470
        %480 = vmatpush.bf16.msra.mxu0 %v469
        %481 = vmatpush.bf16.msra.mxu0 %v468
        %482 = vmatpush.bf16.msra.mxu0 %v467
        %483 = vmatpush.bf16.msra.mxu0 %v466
        %484 = vmatpush.bf16.msra.mxu0 %v465
        %485 = vmatpush.bf16.msra.mxu0 %v464
        %486 = vmatpush.bf16.msra.mxu0 %v463
        %487 = vmatmul.bf16.gmra.mxu0 %v409
        %v488 = vpop.f32.mrf.mxu0
        %v489 = vadd.f32 %v429, %v488
        %v490 = vpop.f32.mrf.mxu0
        %v491 = vadd.f32 %v429, %v490
        %492 = vmatmul.bf16.gmra.mxu0 %v410
        %v493 = vpop.f32.mrf.mxu0
        %v494 = vadd.f32 %v429, %v493
        %v495 = vpop.f32.mrf.mxu0
        %v496 = vadd.f32 %v429, %v495
        %497 = vdwg.mxu0
        %v498 = vmax.f32 %v489, 0.0
        %v499 = vmax.f32 %v491, 0.0
        %v500 = vmax.f32 %v494, 0.0
        %v501 = vmax.f32 %v496, 0.0
        %v502 = vpack.c.bf16 %v499, %v498
        %v503 = vpack.c.bf16 %v501, %v500
        %v504 = vld [vmem:[#allocation7] sm:$0xf]
        %v505 = vld [vmem:[#allocation7 + $0x4] sm:$0xf]
        %v506 = vld [vmem:[#allocation7 + $0x8] sm:$0xf]
        %v507 = vld [vmem:[#allocation7 + $0xc] sm:$0xf]
        %v508 = vld [vmem:[#allocation7 + $0x10] sm:$0xf]
        %v509 = vld [vmem:[#allocation7 + $0x14] sm:$0xf]
        %v510 = vld [vmem:[#allocation7 + $0x18] sm:$0xf]
        %v511 = vld [vmem:[#allocation7 + $0x1c] sm:$0xf]
        %v512 = vld [vmem:[#allocation7 + $0x20] sm:$0xf]
        %v513 = vld [vmem:[#allocation7 + $0x24] sm:$0xf]
        %v514 = vld [vmem:[#allocation7 + $0x28] sm:$0xf]
        %v515 = vld [vmem:[#allocation7 + $0x2c] sm:$0xf]
        %v516 = vld [vmem:[#allocation7 + $0x30] sm:$0xf]
        %v517 = vld [vmem:[#allocation7 + $0x34] sm:$0xf]
        %v518 = vld [vmem:[#allocation7 + $0x38] sm:$0xf]
        %v519 = vld [vmem:[#allocation7 + $0x3c] sm:$0xf]
        %v520 = vld [vmem:[%s4] sm:$0x1]
        %v522 = vperm.slane %v520, 0
        %v540 = vunpack.c.l.b16 %v504
        %v541 = vunpack.c.l.b16 %v505
        %v542 = vunpack.c.l.b16 %v506
        %v543 = vunpack.c.l.b16 %v507
        %v544 = vunpack.c.l.b16 %v508
        %v545 = vunpack.c.l.b16 %v509
        %v546 = vunpack.c.l.b16 %v510
        %v547 = vunpack.c.l.b16 %v511
        %v548 = vunpack.c.l.b16 %v512
        %v549 = vunpack.c.l.b16 %v513
        %v550 = vunpack.c.l.b16 %v514
        %v551 = vunpack.c.l.b16 %v515
        %v552 = vunpack.c.l.b16 %v516
        %v553 = vunpack.c.l.b16 %v517
        %v554 = vunpack.c.l.b16 %v518
        %v555 = vunpack.c.l.b16 %v519
        %v556 = vpack.c.b16 %v541, %v540
        %v557 = vpack.c.b16 %v543, %v542
        %v558 = vpack.c.b16 %v545, %v544
        %v559 = vpack.c.b16 %v547, %v546
        %v560 = vpack.c.b16 %v549, %v548
        %v561 = vpack.c.b16 %v551, %v550
        %v562 = vpack.c.b16 %v553, %v552
        %v563 = vpack.c.b16 %v555, %v554
        %572 = vmatpush.bf16.msra.mxu0 %v563
        %573 = vmatpush.bf16.msra.mxu0 %v562
        %574 = vmatpush.bf16.msra.mxu0 %v561
        %575 = vmatpush.bf16.msra.mxu0 %v560
        %576 = vmatpush.bf16.msra.mxu0 %v559
        %577 = vmatpush.bf16.msra.mxu0 %v558
        %578 = vmatpush.bf16.msra.mxu0 %v557
        %579 = vmatpush.bf16.msra.mxu0 %v556
        %580 = vmatmul.bf16.gmra.mxu0 %v502
        %v581 = vpop.f32.mrf.mxu0
        %v582 = vadd.f32 %v522, %v581
        %v583 = vpop.f32.mrf.mxu0
        %v584 = vadd.f32 %v522, %v583
        %585 = vmatmul.bf16.gmra.mxu0 %v503
        %v586 = vpop.f32.mrf.mxu0
        %v587 = vadd.f32 %v522, %v586
        %v588 = vpop.f32.mrf.mxu0
        %v589 = vadd.f32 %v522, %v588
        %590 = vdwg.mxu0
        %v591 = vmax.f32 %v582, 0.0
        %v592 = vmax.f32 %v584, 0.0
        %v593 = vmax.f32 %v587, 0.0
        %v594 = vmax.f32 %v589, 0.0
        %v595 = vpack.c.bf16 %v592, %v591
        %v596 = vpack.c.bf16 %v594, %v593
        %v597 = vld [vmem:[#allocation8] sm:$0xf]
        %v598 = vld [vmem:[#allocation8 + $0x4] sm:$0xf]
        %v599 = vld [vmem:[#allocation8 + $0x8] sm:$0xf]
        %v600 = vld [vmem:[#allocation8 + $0xc] sm:$0xf]
        %v601 = vld [vmem:[#allocation8 + $0x10] sm:$0xf]
        %v602 = vld [vmem:[#allocation8 + $0x14] sm:$0xf]
        %v603 = vld [vmem:[#allocation8 + $0x18] sm:$0xf]
        %v604 = vld [vmem:[#allocation8 + $0x1c] sm:$0xf]
        %v605 = vld [vmem:[#allocation8 + $0x20] sm:$0xf]
        %v606 = vld [vmem:[#allocation8 + $0x24] sm:$0xf]
        %v607 = vld [vmem:[#allocation8 + $0x28] sm:$0xf]
        %v608 = vld [vmem:[#allocation8 + $0x2c] sm:$0xf]
        %v609 = vld [vmem:[#allocation8 + $0x30] sm:$0xf]
        %v610 = vld [vmem:[#allocation8 + $0x34] sm:$0xf]
        %v611 = vld [vmem:[#allocation8 + $0x38] sm:$0xf]
        %v612 = vld [vmem:[#allocation8 + $0x3c] sm:$0xf]
        %v613 = vld [vmem:[%s6] sm:$0x1]
        %v615 = vperm.slane %v613, 0
        %v633 = vunpack.c.l.b16 %v597
        %v634 = vunpack.c.l.b16 %v598
        %v635 = vunpack.c.l.b16 %v599
        %v636 = vunpack.c.l.b16 %v600
        %v637 = vunpack.c.l.b16 %v601
        %v638 = vunpack.c.l.b16 %v602
        %v639 = vunpack.c.l.b16 %v603
        %v640 = vunpack.c.l.b16 %v604
        %v641 = vunpack.c.l.b16 %v605
        %v642 = vunpack.c.l.b16 %v606
        %v643 = vunpack.c.l.b16 %v607
        %v644 = vunpack.c.l.b16 %v608
        %v645 = vunpack.c.l.b16 %v609
        %v646 = vunpack.c.l.b16 %v610
        %v647 = vunpack.c.l.b16 %v611
        %v648 = vunpack.c.l.b16 %v612
        %v649 = vpack.c.b16 %v634, %v633
        %v650 = vpack.c.b16 %v636, %v635
        %v651 = vpack.c.b16 %v638, %v637
        %v652 = vpack.c.b16 %v640, %v639
        %v653 = vpack.c.b16 %v642, %v641
        %v654 = vpack.c.b16 %v644, %v643
        %v655 = vpack.c.b16 %v646, %v645
        %v656 = vpack.c.b16 %v648, %v647
        %665 = vmatpush.bf16.msra.mxu0 %v656
        %666 = vmatpush.bf16.msra.mxu0 %v655
        %667 = vmatpush.bf16.msra.mxu0 %v654
        %668 = vmatpush.bf16.msra.mxu0 %v653
        %669 = vmatpush.bf16.msra.mxu0 %v652
        %670 = vmatpush.bf16.msra.mxu0 %v651
        %671 = vmatpush.bf16.msra.mxu0 %v650
        %672 = vmatpush.bf16.msra.mxu0 %v649
        %673 = vmatmul.bf16.gmra.mxu0 %v595
        %v674 = vpop.f32.mrf.mxu0
        %v675 = vadd.f32 %v615, %v674
        %v676 = vpop.f32.mrf.mxu0
        %v677 = vadd.f32 %v615, %v676
        %678 = vmatmul.bf16.gmra.mxu0 %v596
        %v679 = vpop.f32.mrf.mxu0
        %v680 = vadd.f32 %v615, %v679
        %v681 = vpop.f32.mrf.mxu0
        %v682 = vadd.f32 %v615, %v681
        %683 = vdwg.mxu0
        %684 = vadd.xlane.f32.xlu0 %v675
        %v685 = vpop.xlane.xlu0 %684
        %686 = vadd.xlane.f32.xlu0 %v677
        %v687 = vpop.xlane.xlu0 %686
        %688 = vadd.xlane.f32.xlu0 %v680
        %v689 = vpop.xlane.xlu0 %688
        %690 = vadd.xlane.f32.xlu0 %v682
        %v691 = vpop.xlane.xlu0 %690
        %v692 = vrcp.pop 128.0
        %v693 = vmul.f32 128.0, %v692
        %v694 = vsub.f32 1.0, %v693
        %v695 = vmul.f32 %v692, %v694
        %v696 = vadd.f32 %v692, %v695
        %vm697 = vweird.f32 %v692
        %v698 = vsel %vm697, %v692, %v696
        %v699 = vmul.f32 %v685, %v698
        %v700 = vmul.f32 %v687, %v698
        %v701 = vmul.f32 %v689, %v698
        %v702 = vmul.f32 %v691, %v698
        %v703 = vsub.f32 %v675, %v699
        %v704 = vsub.f32 %v677, %v700
        %v705 = vsub.f32 %v680, %v701
        %v706 = vsub.f32 %v682, %v702
        %v707 = vmul.f32 %v703, %v703
        %v708 = vmul.f32 %v704, %v704
        %v709 = vmul.f32 %v705, %v705
        %v710 = vmul.f32 %v706, %v706
        %711 = vadd.xlane.f32.xlu0 %v707
        %v712 = vpop.xlane.xlu0 %711
        %713 = vadd.xlane.f32.xlu0 %v708
        %v714 = vpop.xlane.xlu0 %713
        %715 = vadd.xlane.f32.xlu0 %v709
        %v716 = vpop.xlane.xlu0 %715
        %717 = vadd.xlane.f32.xlu0 %v710
        %v718 = vpop.xlane.xlu0 %717
        %v719 = vmul.f32 %v712, %v698
        %v720 = vmul.f32 %v714, %v698
        %v721 = vmul.f32 %v716, %v698
        %v722 = vmul.f32 %v718, %v698
        %v723 = vadd.f32 %v719, 1e-05
        %v724 = vadd.f32 %v720, 1e-05
        %v725 = vadd.f32 %v721, 1e-05
        %v726 = vadd.f32 %v722, 1e-05
        %v727 = vrsqrt.pop %v723
        %v728 = vmul.f32 %v727, %v723
        %v729 = vmul.f32 %v728, %v727
        %v730 = vmul.f32 0.5, %v729
        %v731 = vsub.f32 1.5, %v730
        %v732 = vmul.f32 %v727, %v731
        %vm733 = vweird.f32 %v723
        %vm734 = vweird.f32 %v727
        %vm735 = vmor %vm733, %vm734
        %v736 = vsel %vm735, %v727, %v732
        %v737 = vrsqrt.pop %v724
        %v738 = vmul.f32 %v737, %v724
        %v739 = vmul.f32 %v738, %v737
        %v740 = vmul.f32 0.5, %v739
        %v741 = vsub.f32 1.5, %v740
        %v742 = vmul.f32 %v737, %v741
        %vm743 = vweird.f32 %v724
        %vm744 = vweird.f32 %v737
        %vm745 = vmor %vm743, %vm744
        %v746 = vsel %vm745, %v737, %v742
        %v747 = vrsqrt.pop %v725
        %v748 = vmul.f32 %v747, %v725
        %v749 = vmul.f32 %v748, %v747
        %v750 = vmul.f32 0.5, %v749
        %v751 = vsub.f32 1.5, %v750
        %v752 = vmul.f32 %v747, %v751
        %vm753 = vweird.f32 %v725
        %vm754 = vweird.f32 %v747
        %vm755 = vmor %vm753, %vm754
        %v756 = vsel %vm755, %v747, %v752
        %v757 = vrsqrt.pop %v726
        %v758 = vmul.f32 %v757, %v726
        %v759 = vmul.f32 %v758, %v757
        %v760 = vmul.f32 0.5, %v759
        %v761 = vsub.f32 1.5, %v760
        %v762 = vmul.f32 %v757, %v761
        %vm763 = vweird.f32 %v726
        %vm764 = vweird.f32 %v757
        %vm765 = vmor %vm763, %vm764
        %v766 = vsel %vm765, %v757, %v762
        %v767 = vmul.f32 %v703, %v736
        %v768 = vmul.f32 %v704, %v746
        %v769 = vmul.f32 %v705, %v756
        %v770 = vmul.f32 %v706, %v766
        %v771 = vld [vmem:[%s7] sm:$0x1]
        %v773 = vperm.slane %v771, 0
        %v775 = vmul.f32 %v767, %v773
        %v776 = vmul.f32 %v768, %v773
        %v777 = vmul.f32 %v769, %v773
        %v778 = vmul.f32 %v770, %v773
        %v779 = vld [vmem:[%s8] sm:$0x1]
        %v781 = vperm.slane %v779, 0
        %v783 = vadd.f32 %v775, %v781
        %v784 = vadd.f32 %v776, %v781
        %v785 = vadd.f32 %v777, %v781
        %v786 = vadd.f32 %v778, %v781
        %787 = vst [vmem:[%s402] sm:$0xff] %v783
        %788 = vst [vmem:[%s402 + $0x8] sm:$0xff] %v784
        %789 = vst [vmem:[%s402 + $0x10] sm:$0xff] %v785
        %790 = vst [vmem:[%s402 + $0x18] sm:$0xff] %v786
        %s791 = sand.u32 %s230, 1
        %s792 = scalar_lea.sflag [#allocation4], %s791
        %s793 = sand.u32 %s230, 1
        %s794 = smul.addr %s793, 32
        %s795 = scalar_lea.vmem [#allocation10], %s794
        // Predicated region
        $region73: #{tpu_custom_call.1} parent=55 // pred_check
          %p796 = pneg %p240
        $region74: #{tpu_custom_call.1} parent=55 // pred_check_branch
          %798 = sbr.rel (%p796) target = $region76
        $region75: #{tpu_custom_call.1} parent=55 // pred_region
          %s799 = smul.u32 4, %s28
          %801 = vsyncadd %s792, 0
          %s802 = smul.addr %s799, 8
          %s803 = scalar_lea.hbm %s9, %s802
          %s804 = sshll.u32 %s795, 4
          %s805 = int_to_ptr.vmem [resolvable:$true] %s804
          %s806 = sshll.u32 %s803, 4
          %s807 = int_to_ptr.hbm [resolvable:$true] %s806
          %812 = dma.vmem_to_hbm [thread:$0]  %s805, 512, %s807, %s792, 128, 128, 8
        $region76: #{tpu_custom_call.1} parent=55 // pred_fallthru
          _
      $region56: #{tpu_custom_call.1} parent=5 // pred_fallthru
        _
      %p813 = scmp.le.s32.totalorder 2, %s23
      // Predicated region
      $region77: #{tpu_custom_call.1} parent=5 // pred_check
        %p814 = pneg %p813
      $region78: #{tpu_custom_call.1} parent=5 // pred_check_branch
        %816 = sbr.rel (%p814) target = $region80
      $region79: #{tpu_custom_call.1} parent=5 // pred_region
        %s817 = ssub.s32 %s23, 2
        // Predicated region
        $region81: #{tpu_custom_call.1} parent=79 // pred_check
          %p818 = pneg %p246
        $region82: #{tpu_custom_call.1} parent=79 // pred_check_branch
          %820 = sbr.rel (%p818) target = $region84
        $region83: #{tpu_custom_call.1} parent=79 // pred_region
          %s821 = sand.u32 %s231, 1
          %s822 = scalar_lea.sflag [#allocation4], %s821
          %s823 = sand.u32 %s231, 1
          %s824 = smul.addr %s823, 32
          %s825 = scalar_lea.vmem [#allocation10], %s824
          %827 = dma.done %s822, 512
        $region84: #{tpu_custom_call.1} parent=79 // pred_fallthru
          _
      $region80: #{tpu_custom_call.1} parent=5 // pred_fallthru
        _
    $region6: #{tpu_custom_call.1} parent=1 // loop_footer
      %s27 = sadd.s32 1, %s23
    $region7: #{tpu_custom_call.1} parent=1 // loop_footer_branch
      %22 = sbr.rel target = $region3
    $region8: #{tpu_custom_call.1} parent=1 // loop_exit
      _
    %828 = vsyncpa [#allocation3], 1
    %s829 = scalar_lea.sflag [#allocation3], 1
    %830 = vsyncpa %s829, 1
    %831 = vsyncpa [#allocation6], 1
    %832 = vsyncpa [#allocation9], 1
    %833 = vsyncpa [#allocation4], 1
    %s834 = scalar_lea.sflag [#allocation4], 1
    %835 = vsyncpa %s834, 1

</llo_original>
